<compile_context>
chip_gen: v7x
topology: tpu7x:2x2x1
jax: 0.10.0
libtpu: 0.0.40
codegen_flags: <defaults>
</compile_context>

<pallas_src>
import math

import jax
import jax.numpy as jnp
from jax.experimental import pallas as pl
from jax.experimental.pallas import tpu as pltpu

_LANE = 512  # lane-dense slab width (multiple of 128)


def _tpu_config():
    """Returns (num_cores, rows_per_tile, vmem_limit_bytes), defensively detected."""
    vmem_bytes = 64 * 1024 * 1024  # conservative default (v7x-sized VMEM)
    num_cores = 1
    try:
        info = pltpu.get_tpu_info()
        try:
            vmem_bytes = int(getattr(info, "vmem_capacity_bytes", vmem_bytes))
        except Exception:
            pass
        for name in ("tensorcores_per_chip", "num_tensorcores", "cores_per_chip",
                     "core_count", "num_cores"):
            v = getattr(info, name, None)
            if v is None:
                continue
            try:
                v = int(v)
            except Exception:
                continue
            if v in (1, 2):  # only accept values we can act on safely
                num_cores = v
                break
    except Exception:
        # Not on TPU / API drift: fall back to safe defaults.
        pass
    if vmem_bytes >= 100 * 1024 * 1024:        # 128-MiB VMEM chips (v5e / v6e)
        return num_cores, 2048, 64 * 1024 * 1024
    return num_cores, 1024, 32 * 1024 * 1024   # 64-MiB VMEM chips (v7x) / unknown


def _make_kernel(steps_per_core: int, tile_rows: int, valid_rows: int, ragged: bool):
    """Kernel factory; shape constants are baked in as Python ints (trace-time)."""

    def kernel(pred_ref, targ_ref, out_ref, acc_t, acc_h, acc_d):
        c = pl.program_id(0)       # core axis
        step = pl.program_id(1)    # pipelined reduction axis (row tiles)

        @pl.when(step == 0)
        def _init():
            acc_t[...] = jnp.zeros_like(acc_t)
            acc_h[...] = jnp.zeros_like(acc_h)
            acc_d[...] = jnp.zeros_like(acc_d)

        # Cast per-tile in VMEM; HBM keeps the original dtype (bf16 streams half bytes).
        p = pred_ref[...].astype(jnp.float32)
        t = targ_ref[...].astype(jnp.float32)
        d = p - t
        a_t = jnp.abs(d)            # |p - t|
        a_h = jnp.abs(d - 0.5 * p)  # |0.5 p - t|
        a_d = jnp.abs(d + p)        # |2 p - t|

        def fold(x):
            # (R, LANE) -> (8, LANE): sum over vreg row-bands, pure VALU adds (no XLU).
            r, l = x.shape
            return jnp.sum(x.reshape(r // 8, 8, l), axis=0)

        if ragged:
            # Intended (unclamped) tile index; any row >= valid_rows is Pallas boundary
            # padding (unspecified data) or a redundant clamped tile -> mask it out.
            row_start = (c * steps_per_core + step) * tile_rows
            needs_mask = row_start + tile_rows > valid_rows

            @pl.when(needs_mask)
            def _masked():
                rows = row_start + jax.lax.broadcasted_iota(jnp.int32, a_t.shape, 0)
                m = rows < valid_rows
                acc_t[...] += fold(jnp.where(m, a_t, 0.0))
                acc_h[...] += fold(jnp.where(m, a_h, 0.0))
                acc_d[...] += fold(jnp.where(m, a_d, 0.0))

            @pl.when(jnp.logical_not(needs_mask))
            def _full():
                acc_t[...] += fold(a_t)
                acc_h[...] += fold(a_h)
                acc_d[...] += fold(a_d)
        else:
            acc_t[...] += fold(a_t)
            acc_h[...] += fold(a_h)
            acc_d[...] += fold(a_d)

        @pl.when(step == pl.num_programs(1) - 1)
        def _finalize():
            s_t = jnp.sum(acc_t[...])   # single small XLU reduce per core
            s_h = jnp.sum(acc_h[...])
            s_d = jnp.sum(acc_d[...])
            # Pack the three per-core partial abs-sums into rows 0/1/2 of the out block.
            row = jax.lax.broadcasted_iota(jnp.int32, out_ref.shape, 0)
            out_ref[...] = jnp.where(
                row == 0, s_t, jnp.where(row == 1, s_h, jnp.where(row == 2, s_d, 0.0))
            )

    return kernel


def tempo_loss(predictions: jax.Array, targets: jax.Array) -> jax.Array:
    """Pallas equivalent of TempoLoss.forward. Returns a scalar float32."""
    assert predictions.shape == targets.shape, "predictions/targets shape mismatch"
    # Note: dtypes may differ; each input is cast to f32 per-tile inside the kernel.
    total = int(math.prod(predictions.shape))
    assert total > 0

    num_cores, rows_cap, vmem_limit = _tpu_config()

    n_rows = -(-total // _LANE)
    rem = total % _LANE

    def _prep(x):
        flat = x.reshape(-1)                 # contiguous reshape: no HBM copy
        if rem:
            # Only for non-lane-aligned element counts: pad the tail with < 512 zeros
            # (|0-0| = 0 in all three abs-sums).  Lane-aligned inputs stay zero-copy.
            flat = jnp.pad(flat, (0, _LANE - rem))
        return flat.reshape(n_rows, _LANE)   # keep original dtype

    p2 = _prep(predictions)
    t2 = _prep(targets)

    # Row tile: multiple of 8 (sublane tiling); last tile may be ragged (masked in-kernel).
    tile_rows = min(rows_cap, ((n_rows + 7) // 8) * 8)
    n_tiles = -(-n_rows // tile_rows)
    steps_per_core = -(-n_tiles // num_cores)
    ragged = num_cores * steps_per_core * tile_rows != n_rows

    if num_cores * steps_per_core == n_tiles:
        in_map = lambda c, i: (c * steps_per_core + i, 0)
    else:
        # Clamp redundant per-core tiles onto the last valid tile; their contribution
        # is masked to zero inside the kernel (intended rows are >= n_rows).
        last_tile = n_tiles - 1
        in_map = lambda c, i: (jnp.minimum(c * steps_per_core + i, last_tile), 0)

    if num_cores > 1:
        core_sem = getattr(pltpu, "CORE_PARALLEL", "parallel")
        step_sem = getattr(pltpu, "ARBITRARY", "arbitrary")
    else:
        core_sem, step_sem = "arbitrary", "arbitrary"

    bytes_accessed = (total * (predictions.dtype.itemsize + targets.dtype.itemsize)
                      + num_cores * 8 * 128 * 4)
    cost = pl.CostEstimate(flops=10 * total, transcendentals=0,
                           bytes_accessed=bytes_accessed)

    partials = pl.pallas_call(
        _make_kernel(steps_per_core, tile_rows, n_rows, ragged),
        out_shape=jax.ShapeDtypeStruct((num_cores * 8, 128), jnp.float32),
        grid_spec=pltpu.PrefetchScalarGridSpec(
            num_scalar_prefetch=0,
            grid=(num_cores, steps_per_core),
            in_specs=[
                pl.BlockSpec((tile_rows, _LANE), in_map),
                pl.BlockSpec((tile_rows, _LANE), in_map),
            ],
            out_specs=pl.BlockSpec((8, 128), lambda c, i: (c, 0)),
            scratch_shapes=[
                pltpu.VMEM((8, _LANE), jnp.float32),
                pltpu.VMEM((8, _LANE), jnp.float32),
                pltpu.VMEM((8, _LANE), jnp.float32),
            ],
        ),
        compiler_params=pltpu.CompilerParams(
            dimension_semantics=(core_sem, step_sem),
            vmem_limit_bytes=vmem_limit,
        ),
        cost_estimate=cost,
    )(p2, t2)

    # Tiny finalize in plain JAX: combine per-core partial sums, take the min of the
    # three MAEs (divide by the TRUE, unpadded element count), then square.
    sums = partials.reshape(num_cores, 8, 128)[:, :3, 0].sum(axis=0)  # (3,)
    mae = jnp.min(sums) * (1.0 / float(total))
    return (mae * mae).astype(jnp.float32)


def tempo_loss_ref(predictions: jax.Array, targets: jax.Array) -> jax.Array:
    """Pure-JAX reference matching the PyTorch module."""
    p = predictions.astype(jnp.float32)
    t = targets.astype(jnp.float32)
    tempo_err = jnp.mean(jnp.abs(p - t))
    half_err = jnp.mean(jnp.abs(0.5 * p - t))
    double_err = jnp.mean(jnp.abs(2.0 * p - t))
    return jnp.minimum(jnp.minimum(tempo_err, half_err), double_err) ** 2


if __name__ == "__main__":
    key = jax.random.PRNGKey(0)
    kp, kt, kp2, kt2, kp3, kt3 = jax.random.split(key, 6)

    # Test 1: f32, non-lane-aligned total (tail pad + in-kernel ragged-row mask path).
    pred = 60.0 + 120.0 * jax.random.uniform(kp, (13, 100), dtype=jnp.float32)
    targ = 60.0 + 120.0 * jax.random.uniform(kt, (13, 100), dtype=jnp.float32)
    loss = tempo_loss(pred, targ)
    jax.block_until_ready(loss)
    ref = tempo_loss_ref(pred, targ)
    assert jnp.allclose(loss, ref, rtol=1e-4, atol=1e-4), (loss, ref)

    # Test 2: bf16, 3-D shape (original-dtype streaming, per-tile f32 cast in kernel).
    pred_bf = (60.0 + 120.0 * jax.random.uniform(kp2, (2, 6, 50), dtype=jnp.float32)).astype(jnp.bfloat16)
    targ_bf = (60.0 + 120.0 * jax.random.uniform(kt2, (2, 6, 50), dtype=jnp.float32)).astype(jnp.bfloat16)
    loss_bf = tempo_loss(pred_bf, targ_bf)
    jax.block_until_ready(loss_bf)
    ref_bf = tempo_loss_ref(pred_bf, targ_bf)
    assert jnp.allclose(loss_bf, ref_bf, rtol=1e-3, atol=1e-3), (loss_bf, ref_bf)

    # Test 3: f32, lane-aligned total (zero-copy reshape, no pad, no in-kernel mask).
    pred_al = 60.0 + 120.0 * jax.random.uniform(kp3, (8, 512), dtype=jnp.float32)
    targ_al = 60.0 + 120.0 * jax.random.uniform(kt3, (8, 512), dtype=jnp.float32)
    loss_al = tempo_loss(pred_al, targ_al)
    jax.block_until_ready(loss_al)
    ref_al = tempo_loss_ref(pred_al, targ_al)
    assert jnp.allclose(loss_al, ref_al, rtol=1e-4, atol=1e-4), (loss_al, ref_al)

    print("KERNEL_OK")
</pallas_src>

<mosaic_0001>
module attributes {stable_mosaic.version = 11 : i64} {
  func.func @kernel(%arg0: i32, %arg1: i32, %arg2: memref<8x512xf32, #tpu.memory_space<vmem>>, %arg3: memref<8x512xf32, #tpu.memory_space<vmem>>, %arg4: memref<8x128xf32, #tpu.memory_space<vmem>>, %arg5: memref<8x512xf32, #tpu.memory_space<vmem>>, %arg6: memref<8x512xf32, #tpu.memory_space<vmem>>, %arg7: memref<8x512xf32, #tpu.memory_space<vmem>>) attributes {dimension_semantics = [#tpu.dimension_semantics<arbitrary>, #tpu.dimension_semantics<arbitrary>], iteration_bounds = array<i64: 1, 1>, scalar_prefetch = 0 : i64, scratch_operands = 3 : i64, tpu.core_type = #tpu.core_type<tc>, window_params = [{transform_indices = @transform_0, window_bounds = array<i64: 8, 512>}, {transform_indices = @transform_1, window_bounds = array<i64: 8, 512>}, {transform_indices = @transform_2, window_bounds = array<i64: 8, 128>}]} {
    %c0_i32 = arith.constant 0 : i32
    %0 = arith.cmpi eq, %arg1, %c0_i32 : i32
    %1 = arith.extui %0 : i1 to i32
    %c0_i32_0 = arith.constant 0 : i32
    %2 = arith.cmpi ne, %1, %c0_i32_0 : i32
    scf.if %2 {
      %cst_9 = arith.constant 0.000000e+00 : f32
      %26 = vector.broadcast %cst_9 : f32 to vector<8x512xf32>
      %c0_10 = arith.constant 0 : index
      %c0_11 = arith.constant 0 : index
      %27 = vector.load %arg5[%c0_10, %c0_11] : memref<8x512xf32, #tpu.memory_space<vmem>>, vector<8x512xf32>
      tpu.vector_store %arg5[%c0_10, %c0_11], %26 {strides = array<i32>} : memref<8x512xf32, #tpu.memory_space<vmem>>, vector<8x512xf32>,
      %cst_12 = arith.constant 0.000000e+00 : f32
      %28 = vector.broadcast %cst_12 : f32 to vector<8x512xf32>
      %c0_13 = arith.constant 0 : index
      %c0_14 = arith.constant 0 : index
      %29 = vector.load %arg6[%c0_13, %c0_14] : memref<8x512xf32, #tpu.memory_space<vmem>>, vector<8x512xf32>
      tpu.vector_store %arg6[%c0_13, %c0_14], %28 {strides = array<i32>} : memref<8x512xf32, #tpu.memory_space<vmem>>, vector<8x512xf32>,
      %cst_15 = arith.constant 0.000000e+00 : f32
      %30 = vector.broadcast %cst_15 : f32 to vector<8x512xf32>
      %c0_16 = arith.constant 0 : index
      %c0_17 = arith.constant 0 : index
      %31 = vector.load %arg7[%c0_16, %c0_17] : memref<8x512xf32, #tpu.memory_space<vmem>>, vector<8x512xf32>
      tpu.vector_store %arg7[%c0_16, %c0_17], %30 {strides = array<i32>} : memref<8x512xf32, #tpu.memory_space<vmem>>, vector<8x512xf32>,
    } else {
    }
    %c0 = arith.constant 0 : index
    %c0_1 = arith.constant 0 : index
    %3 = vector.load %arg2[%c0, %c0_1] : memref<8x512xf32, #tpu.memory_space<vmem>>, vector<8x512xf32>
    %c0_2 = arith.constant 0 : index
    %c0_3 = arith.constant 0 : index
    %4 = vector.load %arg3[%c0_2, %c0_3] : memref<8x512xf32, #tpu.memory_space<vmem>>, vector<8x512xf32>
    %5 = arith.subf %3, %4 : vector<8x512xf32>
    %6 = math.absf %5 : vector<8x512xf32>
    %cst = arith.constant 5.000000e-01 : f32
    %7 = vector.broadcast %cst : f32 to vector<8x512xf32>
    %8 = arith.mulf %7, %3 : vector<8x512xf32>
    %9 = arith.subf %5, %8 : vector<8x512xf32>
    %10 = math.absf %9 : vector<8x512xf32>
    %11 = arith.addf %5, %3 : vector<8x512xf32>
    %12 = math.absf %11 : vector<8x512xf32>
    %c1_i32 = arith.constant 1 : i32
    %13 = arith.muli %arg0, %c1_i32 : i32
    %14 = arith.addi %13, %arg1 : i32
    %c8_i32 = arith.constant 8 : i32
    %15 = arith.muli %14, %c8_i32 : i32
    %c8_i32_4 = arith.constant 8 : i32
    %16 = arith.addi %15, %c8_i32_4 : i32
    %c3_i32 = arith.constant 3 : i32
    %17 = arith.cmpi sgt, %16, %c3_i32 : i32
    %18 = arith.extui %17 : i1 to i32
    %c0_i32_5 = arith.constant 0 : i32
    %19 = arith.cmpi ne, %18, %c0_i32_5 : i32
    scf.if %19 {
      %26 = tpu.iota {dimensions = array<i32: 0>} : vector<8x512xi32>
      %27 = vector.broadcast %15 : i32 to vector<8x512xi32>
      %28 = arith.addi %27, %26 : vector<8x512xi32>
      %c3_i32_9 = arith.constant 3 : i32
      %29 = vector.broadcast %c3_i32_9 : i32 to vector<8x512xi32>
      %30 = arith.cmpi slt, %28, %29 : vector<8x512xi32>
      %c0_10 = arith.constant 0 : index
      %c0_11 = arith.constant 0 : index
      %31 = vector.load %arg5[%c0_10, %c0_11] : memref<8x512xf32, #tpu.memory_space<vmem>>, vector<8x512xf32>
      %cst_12 = arith.constant 0.000000e+00 : f32
      %32 = vector.broadcast %cst_12 : f32 to vector<8x512xf32>
      %33 = arith.select %30, %6, %32 : vector<8x512xi1>, vector<8x512xf32>
      %34 = vector.shape_cast %33 : vector<8x512xf32> to vector<1x8x512xf32>
      %cst_13 = arith.constant dense<0.000000e+00> : vector<8x512xf32>
      %35 = vector.multi_reduction <add>, %34, %cst_13 [0] : vector<1x8x512xf32> to vector<8x512xf32>
      %36 = arith.addf %31, %35 : vector<8x512xf32>
      %c0_14 = arith.constant 0 : index
      %c0_15 = arith.constant 0 : index
      %37 = vector.load %arg5[%c0_14, %c0_15] : memref<8x512xf32, #tpu.memory_space<vmem>>, vector<8x512xf32>
      tpu.vector_store %arg5[%c0_14, %c0_15], %36 {strides = array<i32>} : memref<8x512xf32, #tpu.memory_space<vmem>>, vector<8x512xf32>,
      %c0_16 = arith.constant 0 : index
      %c0_17 = arith.constant 0 : index
      %38 = vector.load %arg6[%c0_16, %c0_17] : memref<8x512xf32, #tpu.memory_space<vmem>>, vector<8x512xf32>
      %cst_18 = arith.constant 0.000000e+00 : f32
      %39 = vector.broadcast %cst_18 : f32 to vector<8x512xf32>
      %40 = arith.select %30, %10, %39 : vector<8x512xi1>, vector<8x512xf32>
      %41 = vector.shape_cast %40 : vector<8x512xf32> to vector<1x8x512xf32>
      %cst_19 = arith.constant dense<0.000000e+00> : vector<8x512xf32>
      %42 = vector.multi_reduction <add>, %41, %cst_19 [0] : vector<1x8x512xf32> to vector<8x512xf32>
      %43 = arith.addf %38, %42 : vector<8x512xf32>
      %c0_20 = arith.constant 0 : index
      %c0_21 = arith.constant 0 : index
      %44 = vector.load %arg6[%c0_20, %c0_21] : memref<8x512xf32, #tpu.memory_space<vmem>>, vector<8x512xf32>
      tpu.vector_store %arg6[%c0_20, %c0_21], %43 {strides = array<i32>} : memref<8x512xf32, #tpu.memory_space<vmem>>, vector<8x512xf32>,
      %c0_22 = arith.constant 0 : index
      %c0_23 = arith.constant 0 : index
      %45 = vector.load %arg7[%c0_22, %c0_23] : memref<8x512xf32, #tpu.memory_space<vmem>>, vector<8x512xf32>
      %cst_24 = arith.constant 0.000000e+00 : f32
      %46 = vector.broadcast %cst_24 : f32 to vector<8x512xf32>
      %47 = arith.select %30, %12, %46 : vector<8x512xi1>, vector<8x512xf32>
      %48 = vector.shape_cast %47 : vector<8x512xf32> to vector<1x8x512xf32>
      %cst_25 = arith.constant dense<0.000000e+00> : vector<8x512xf32>
      %49 = vector.multi_reduction <add>, %48, %cst_25 [0] : vector<1x8x512xf32> to vector<8x512xf32>
      %50 = arith.addf %45, %49 : vector<8x512xf32>
      %c0_26 = arith.constant 0 : index
      %c0_27 = arith.constant 0 : index
      %51 = vector.load %arg7[%c0_26, %c0_27] : memref<8x512xf32, #tpu.memory_space<vmem>>, vector<8x512xf32>
      tpu.vector_store %arg7[%c0_26, %c0_27], %50 {strides = array<i32>} : memref<8x512xf32, #tpu.memory_space<vmem>>, vector<8x512xf32>,
    } else {
    }
    %true = arith.constant true
    %20 = arith.xori %17, %true : i1
    %21 = arith.extui %20 : i1 to i32
    %c0_i32_6 = arith.constant 0 : i32
    %22 = arith.cmpi ne, %21, %c0_i32_6 : i32
    scf.if %22 {
      %c0_9 = arith.constant 0 : index
      %c0_10 = arith.constant 0 : index
      %26 = vector.load %arg5[%c0_9, %c0_10] : memref<8x512xf32, #tpu.memory_space<vmem>>, vector<8x512xf32>
      %27 = vector.shape_cast %6 : vector<8x512xf32> to vector<1x8x512xf32>
      %cst_11 = arith.constant dense<0.000000e+00> : vector<8x512xf32>
      %28 = vector.multi_reduction <add>, %27, %cst_11 [0] : vector<1x8x512xf32> to vector<8x512xf32>
      %29 = arith.addf %26, %28 : vector<8x512xf32>
      %c0_12 = arith.constant 0 : index
      %c0_13 = arith.constant 0 : index
      %30 = vector.load %arg5[%c0_12, %c0_13] : memref<8x512xf32, #tpu.memory_space<vmem>>, vector<8x512xf32>
      tpu.vector_store %arg5[%c0_12, %c0_13], %29 {strides = array<i32>} : memref<8x512xf32, #tpu.memory_space<vmem>>, vector<8x512xf32>,
      %c0_14 = arith.constant 0 : index
      %c0_15 = arith.constant 0 : index
      %31 = vector.load %arg6[%c0_14, %c0_15] : memref<8x512xf32, #tpu.memory_space<vmem>>, vector<8x512xf32>
      %32 = vector.shape_cast %10 : vector<8x512xf32> to vector<1x8x512xf32>
      %cst_16 = arith.constant dense<0.000000e+00> : vector<8x512xf32>
      %33 = vector.multi_reduction <add>, %32, %cst_16 [0] : vector<1x8x512xf32> to vector<8x512xf32>
      %34 = arith.addf %31, %33 : vector<8x512xf32>
      %c0_17 = arith.constant 0 : index
      %c0_18 = arith.constant 0 : index
      %35 = vector.load %arg6[%c0_17, %c0_18] : memref<8x512xf32, #tpu.memory_space<vmem>>, vector<8x512xf32>
      tpu.vector_store %arg6[%c0_17, %c0_18], %34 {strides = array<i32>} : memref<8x512xf32, #tpu.memory_space<vmem>>, vector<8x512xf32>,
      %c0_19 = arith.constant 0 : index
      %c0_20 = arith.constant 0 : index
      %36 = vector.load %arg7[%c0_19, %c0_20] : memref<8x512xf32, #tpu.memory_space<vmem>>, vector<8x512xf32>
      %37 = vector.shape_cast %12 : vector<8x512xf32> to vector<1x8x512xf32>
      %cst_21 = arith.constant dense<0.000000e+00> : vector<8x512xf32>
      %38 = vector.multi_reduction <add>, %37, %cst_21 [0] : vector<1x8x512xf32> to vector<8x512xf32>
      %39 = arith.addf %36, %38 : vector<8x512xf32>
      %c0_22 = arith.constant 0 : index
      %c0_23 = arith.constant 0 : index
      %40 = vector.load %arg7[%c0_22, %c0_23] : memref<8x512xf32, #tpu.memory_space<vmem>>, vector<8x512xf32>
      tpu.vector_store %arg7[%c0_22, %c0_23], %39 {strides = array<i32>} : memref<8x512xf32, #tpu.memory_space<vmem>>, vector<8x512xf32>,
    } else {
    }
    %c0_i32_7 = arith.constant 0 : i32
    %23 = arith.cmpi eq, %arg1, %c0_i32_7 : i32
    %24 = arith.extui %23 : i1 to i32
    %c0_i32_8 = arith.constant 0 : i32
    %25 = arith.cmpi ne, %24, %c0_i32_8 : i32
    scf.if %25 {
      %c0_9 = arith.constant 0 : index
      %c0_10 = arith.constant 0 : index
      %26 = vector.load %arg5[%c0_9, %c0_10] : memref<8x512xf32, #tpu.memory_space<vmem>>, vector<8x512xf32>
      %27 = vector.shape_cast %26 : vector<8x512xf32> to vector<1x8x512xf32>
      %cst_11 = arith.constant dense<0.000000e+00> : vector<1xf32>
      %28 = vector.multi_reduction <add>, %27, %cst_11 [1, 2] : vector<1x8x512xf32> to vector<1xf32>
      %29 = vector.shape_cast %28 : vector<1xf32> to vector<1x1x1xf32>
      %30 = vector.extract %29[0, 0, 0] : f32 from vector<1x1x1xf32>
      %c0_12 = arith.constant 0 : index
      %c0_13 = arith.constant 0 : index
      %31 = vector.load %arg6[%c0_12, %c0_13] : memref<8x512xf32, #tpu.memory_space<vmem>>, vector<8x512xf32>
      %32 = vector.shape_cast %31 : vector<8x512xf32> to vector<1x8x512xf32>
      %cst_14 = arith.constant dense<0.000000e+00> : vector<1xf32>
      %33 = vector.multi_reduction <add>, %32, %cst_14 [1, 2] : vector<1x8x512xf32> to vector<1xf32>
      %34 = vector.shape_cast %33 : vector<1xf32> to vector<1x1x1xf32>
      %35 = vector.extract %34[0, 0, 0] : f32 from vector<1x1x1xf32>
      %c0_15 = arith.constant 0 : index
      %c0_16 = arith.constant 0 : index
      %36 = vector.load %arg7[%c0_15, %c0_16] : memref<8x512xf32, #tpu.memory_space<vmem>>, vector<8x512xf32>
      %37 = vector.shape_cast %36 : vector<8x512xf32> to vector<1x8x512xf32>
      %cst_17 = arith.constant dense<0.000000e+00> : vector<1xf32>
      %38 = vector.multi_reduction <add>, %37, %cst_17 [1, 2] : vector<1x8x512xf32> to vector<1xf32>
      %39 = vector.shape_cast %38 : vector<1xf32> to vector<1x1x1xf32>
      %40 = vector.extract %39[0, 0, 0] : f32 from vector<1x1x1xf32>
      %41 = tpu.iota {dimensions = array<i32: 0>} : vector<8x128xi32>
      %c0_i32_18 = arith.constant 0 : i32
      %42 = vector.broadcast %c0_i32_18 : i32 to vector<8x128xi32>
      %43 = arith.cmpi eq, %41, %42 : vector<8x128xi32>
      %c1_i32_19 = arith.constant 1 : i32
      %44 = vector.broadcast %c1_i32_19 : i32 to vector<8x128xi32>
      %45 = arith.cmpi eq, %41, %44 : vector<8x128xi32>
      %c2_i32 = arith.constant 2 : i32
      %46 = vector.broadcast %c2_i32 : i32 to vector<8x128xi32>
      %47 = arith.cmpi eq, %41, %46 : vector<8x128xi32>
      %cst_20 = arith.constant 0.000000e+00 : f32
      %48 = vector.broadcast %40 : f32 to vector<8x128xf32>
      %49 = vector.broadcast %cst_20 : f32 to vector<8x128xf32>
      %50 = arith.select %47, %48, %49 : vector<8x128xi1>, vector<8x128xf32>
      %51 = vector.broadcast %35 : f32 to vector<8x128xf32>
      %52 = arith.select %45, %51, %50 : vector<8x128xi1>, vector<8x128xf32>
      %53 = vector.broadcast %30 : f32 to vector<8x128xf32>
      %54 = arith.select %43, %53, %52 : vector<8x128xi1>, vector<8x128xf32>
      %c0_21 = arith.constant 0 : index
      %c0_22 = arith.constant 0 : index
      %55 = vector.load %arg4[%c0_21, %c0_22] : memref<8x128xf32, #tpu.memory_space<vmem>>, vector<8x128xf32>
      tpu.vector_store %arg4[%c0_21, %c0_22], %54 {strides = array<i32>} : memref<8x128xf32, #tpu.memory_space<vmem>>, vector<8x128xf32>,
    } else {
    }
    return
  }
  func.func @transform_0(%arg0: i32, %arg1: i32) -> (i32, i32) {
    %c1_i32 = arith.constant 1 : i32
    %0 = arith.muli %arg0, %c1_i32 : i32
    %1 = arith.addi %0, %arg1 : i32
    %c0_i32 = arith.constant 0 : i32
    %c0_i32_0 = arith.constant 0 : i32
    return %1, %c0_i32 : i32, i32
  }
  func.func @transform_1(%arg0: i32, %arg1: i32) -> (i32, i32) {
    %c1_i32 = arith.constant 1 : i32
    %0 = arith.muli %arg0, %c1_i32 : i32
    %1 = arith.addi %0, %arg1 : i32
    %c0_i32 = arith.constant 0 : i32
    %c0_i32_0 = arith.constant 0 : i32
    return %1, %c0_i32 : i32, i32
  }
  func.func @transform_2(%arg0: i32, %arg1: i32) -> (i32, i32) {
    %c0_i32 = arith.constant 0 : i32
    %c0_i32_0 = arith.constant 0 : i32
    return %arg0, %c0_i32 : i32, i32
  }
}

</mosaic_0001>

<llo_original>
// kernel: tpu_custom_call.1
$region0: #{tpu_custom_call.1}
  #allocation0 [shape = 'u32[]', space=smem, size = 0x4, offset = 0x4, fixed_abs, tag = 'smem constant byte address 0x4 - core index']
  #allocation1 [shape = 'u32[144,128]{1,0:T(1,128)}', space=vmem, size = 0x12000, scoped, tag = 'internal scratch']
  #allocation2 [shape = 'f32[8,512]{1,0:T(8,128)}', space=vmem, size = 0x4000, scoped, tag = 'scratch operand']
  #allocation3 [shape = 'f32[8,512]{1,0:T(8,128)}', space=vmem, size = 0x4000, scoped, tag = 'scratch operand']
  #allocation4 [shape = 'f32[8,512]{1,0:T(8,128)}', space=vmem, size = 0x4000, scoped, tag = 'scratch operand']
  %s0 = inlined_call_operand.hbm [shape: f32[3,512], index: 0, kind: input, shape index: {}]
  %s1 = inlined_call_operand.hbm [shape: f32[3,512], index: 1, kind: input, shape index: {}]
  %s2 = inlined_call_operand.hbm [shape: f32[8,128], index: 2, kind: output, shape index: {}]
  %s3 = sld [smem:[#allocation0]]
  $region42: #{tpu_custom_call.1} parent=0
    _
  %s5 = ssub.s32 1, %s3
  %s6 = scalar_select 0, %s5, %s3
  $region1: #{tpu_custom_call.1} parent=0
    #allocation5 [shape = 'u8[16384]{0}', space=vmem, size = 0x4000, scoped, tag = 'input window, operand 0, single buffered']
    #allocation6 [shape = 's32[1]{0}', space=sflag, size = 0x4, scoped, tag = 'scoped memory for tpu_custom_call.1']
    #allocation7 [shape = 's32[1]{0}', space=sflag, size = 0x4, scoped, tag = 'scoped memory for tpu_custom_call.1']
    #allocation8 [shape = 'u8[16384]{0}', space=vmem, size = 0x4000, scoped, tag = 'input window, operand 1, single buffered']
    #allocation9 [shape = 's32[1]{0}', space=sflag, size = 0x4, scoped, tag = 'scoped memory for tpu_custom_call.1']
    #allocation10 [shape = 'u8[4096]{0}', space=vmem, size = 0x1000, scoped, tag = 'output window, operand 0, single buffered']
    %7 = vsyncpa [#allocation6], 0
    %8 = vsyncpa [#allocation9], 0
    %9 = vsyncpa [#allocation7], 0
    // Predicated region
    $region2: #{tpu_custom_call.1} parent=1 // pred_check
      _
    $region3: #{tpu_custom_call.1} parent=1 // pred_check_branch
      %11 = sbr.rel (0) target = $region5
    $region4: #{tpu_custom_call.1} parent=1 // pred_region
      %s12 = sadd.s32 0, 0
      %s13 = smul.u32 2, %s12
      %s14 = ssub.s32 1, %s13
      %s15 = smul.u32 64, %s14
      %s16 = smul.u32 %s15, 4
      %s18 = ssub.s32 512, %s16
      %19 = vsyncadd [#allocation6], %s18
      %p20 = scmp.ne.s32.totalorder 0, %s16
      %s21 = smul.addr %s13, 4
      %s22 = smul.addr %s21, 64
      %s23 = scalar_lea.hbm %s0, %s22
      %s24 = smul.u32 16, %s14
      %s25 = sshll.u32 [#allocation5], 4
      %s26 = int_to_ptr.vmem [resolvable:$true] %s25
      %s27 = sshll.u32 %s24, 4
      %31 = dma.hbm_to_vmem [thread:$0]  (%p20), %s23, %s27, %s26, [#allocation6], 256, 256, 16
    $region5: #{tpu_custom_call.1} parent=1 // pred_fallthru
      _
    // Predicated region
    $region6: #{tpu_custom_call.1} parent=1 // pred_check
      _
    $region7: #{tpu_custom_call.1} parent=1 // pred_check_branch
      %33 = sbr.rel (0) target = $region9
    $region8: #{tpu_custom_call.1} parent=1 // pred_region
      %s34 = sadd.s32 0, 0
      %s35 = smul.u32 2, %s34
      %s36 = ssub.s32 1, %s35
      %s37 = smul.u32 64, %s36
      %s38 = smul.u32 %s37, 4
      %s40 = ssub.s32 512, %s38
      %41 = vsyncadd [#allocation9], %s40
      %p42 = scmp.ne.s32.totalorder 0, %s38
      %s43 = smul.addr %s35, 4
      %s44 = smul.addr %s43, 64
      %s45 = scalar_lea.hbm %s1, %s44
      %s46 = smul.u32 16, %s36
      %s47 = sshll.u32 [#allocation8], 4
      %s48 = int_to_ptr.vmem [resolvable:$true] %s47
      %s49 = sshll.u32 %s46, 4
      %53 = dma.hbm_to_vmem [thread:$0]  (%p42), %s45, %s49, %s48, [#allocation9], 256, 256, 16
    $region9: #{tpu_custom_call.1} parent=1 // pred_fallthru
      _
    // Predicated region
    $region10: #{tpu_custom_call.1} parent=1 // pred_check
      _
    $region11: #{tpu_custom_call.1} parent=1 // pred_check_branch
      %55 = sbr.rel (0) target = $region13
    $region12: #{tpu_custom_call.1} parent=1 // pred_region
      %56 = dma.done [#allocation6], 512
    $region13: #{tpu_custom_call.1} parent=1 // pred_fallthru
      _
    // Predicated region
    $region14: #{tpu_custom_call.1} parent=1 // pred_check
      _
    $region15: #{tpu_custom_call.1} parent=1 // pred_check_branch
      %58 = sbr.rel (0) target = $region17
    $region16: #{tpu_custom_call.1} parent=1 // pred_region
      %59 = dma.done [#allocation9], 512
    $region17: #{tpu_custom_call.1} parent=1 // pred_fallthru
      _
    %s60 = sadd.s32 0, 0
    %s61 = smul.u32 2, %s60
    %s62 = ssub.s32 1, %s61
    %s63 = smul.u32 64, %s62
    %s64 = smul.u32 %s63, 4
    %s65 = sadd.s32 0, 0
    %s66 = smul.u32 2, %s65
    %s67 = ssub.s32 1, %s66
    %s68 = smul.u32 64, %s67
    %s69 = smul.u32 %s68, 4
    %p70 = scmp.eq.s32.totalorder 0, 0
    // Predicated region
    $region18: #{tpu_custom_call.1} parent=1 // pred_check
      %p71 = pneg %p70
    $region19: #{tpu_custom_call.1} parent=1 // pred_check_branch
      %73 = sbr.rel (%p71) target = $region21
    $region20: #{tpu_custom_call.1} parent=1 // pred_region
      %74 = vst [vmem:[#allocation2] sm:$0xff] 0.0
      %75 = vst [vmem:[#allocation2 + $0x8] sm:$0xff] 0.0
      %76 = vst [vmem:[#allocation2 + $0x10] sm:$0xff] 0.0
      %77 = vst [vmem:[#allocation2 + $0x18] sm:$0xff] 0.0
      %78 = vst [vmem:[#allocation3] sm:$0xff] 0.0
      %79 = vst [vmem:[#allocation3 + $0x8] sm:$0xff] 0.0
      %80 = vst [vmem:[#allocation3 + $0x10] sm:$0xff] 0.0
      %81 = vst [vmem:[#allocation3 + $0x18] sm:$0xff] 0.0
      %82 = vst [vmem:[#allocation4] sm:$0xff] 0.0
      %83 = vst [vmem:[#allocation4 + $0x8] sm:$0xff] 0.0
      %84 = vst [vmem:[#allocation4 + $0x10] sm:$0xff] 0.0
      %85 = vst [vmem:[#allocation4 + $0x18] sm:$0xff] 0.0
    $region21: #{tpu_custom_call.1} parent=1 // pred_fallthru
      _
    %v86 = vld [vmem:[#allocation5] sm:$0xff]
    %v87 = vld [vmem:[#allocation5 + $0x8] sm:$0xff]
    %v88 = vld [vmem:[#allocation5 + $0x10] sm:$0xff]
    %v89 = vld [vmem:[#allocation5 + $0x18] sm:$0xff]
    %v90 = vld [vmem:[#allocation8] sm:$0xff]
    %v91 = vld [vmem:[#allocation8 + $0x8] sm:$0xff]
    %v92 = vld [vmem:[#allocation8 + $0x10] sm:$0xff]
    %v93 = vld [vmem:[#allocation8 + $0x18] sm:$0xff]
    %v94 = vsub.f32 %v86, %v90
    %v95 = vsub.f32 %v87, %v91
    %v96 = vsub.f32 %v88, %v92
    %v97 = vsub.f32 %v89, %v93
    %v98 = vand.u32 2147483647, %v94
    %v99 = vand.u32 2147483647, %v95
    %v100 = vand.u32 2147483647, %v96
    %v101 = vand.u32 2147483647, %v97
    %v102 = vmul.f32 %v86, 0.5
    %v103 = vmul.f32 %v87, 0.5
    %v104 = vmul.f32 %v88, 0.5
    %v105 = vmul.f32 %v89, 0.5
    %v106 = vsub.f32 %v94, %v102
    %v107 = vsub.f32 %v95, %v103
    %v108 = vsub.f32 %v96, %v104
    %v109 = vsub.f32 %v97, %v105
    %v110 = vand.u32 2147483647, %v106
    %v111 = vand.u32 2147483647, %v107
    %v112 = vand.u32 2147483647, %v108
    %v113 = vand.u32 2147483647, %v109
    %v114 = vadd.f32 %v94, %v86
    %v115 = vadd.f32 %v95, %v87
    %v116 = vadd.f32 %v96, %v88
    %v117 = vadd.f32 %v97, %v89
    %v118 = vand.u32 2147483647, %v114
    %v119 = vand.u32 2147483647, %v115
    %v120 = vand.u32 2147483647, %v116
    %v121 = vand.u32 2147483647, %v117
    %s122 = sadd.s32 0, 0
    %s123 = smul.u32 %s122, 8
    %s124 = sadd.s32 %s123, 8
    %p125 = scmp.gt.s32.totalorder %s124, 3
    // Predicated region
    $region22: #{tpu_custom_call.1} parent=1 // pred_check
      %p126 = pneg %p125
    $region23: #{tpu_custom_call.1} parent=1 // pred_check_branch
      %128 = sbr.rel (%p126) target = $region25
    $region24: #{tpu_custom_call.1} parent=1 // pred_region
      %v129 = vlaneseq
      %v130 = vshrl.u32 %v129, 7
      %v131 = vstv %s123
      %v132 = vadd.s32 %v131, %v130
      %vm133 = vcmp.lt.s32.totalorder %v132, 3
      %v134 = vld [vmem:[#allocation2] sm:$0xff]
      %v135 = vld [vmem:[#allocation2 + $0x8] sm:$0xff]
      %v136 = vld [vmem:[#allocation2 + $0x10] sm:$0xff]
      %v137 = vld [vmem:[#allocation2 + $0x18] sm:$0xff]
      %v142 = vcombine.low %v98, %v100
      %v143 = vcombine.high %v98, %v100
      %v144 = vcombine.low %v99, %v101
      %v145 = vcombine.high %v99, %v101
      %v150 = vsel %vm133, %v142, 0.0
      %v151 = vsel %vm133, %v143, 0.0
      %v152 = vsel %vm133, %v144, 0.0
      %v153 = vsel %vm133, %v145, 0.0
      %v154 = vadd.f32 %v150, 0.0
      %v155 = vadd.f32 %v151, 0.0
      %v156 = vadd.f32 %v152, 0.0
      %v157 = vadd.f32 %v153, 0.0
      %v158 = vadd.f32 %v134, %v154
      %v159 = vadd.f32 %v135, %v155
      %v160 = vadd.f32 %v136, %v156
      %v161 = vadd.f32 %v137, %v157
      %162 = vst [vmem:[#allocation2] sm:$0xff] %v158
      %163 = vst [vmem:[#allocation2 + $0x8] sm:$0xff] %v159
      %164 = vst [vmem:[#allocation2 + $0x10] sm:$0xff] %v160
      %165 = vst [vmem:[#allocation2 + $0x18] sm:$0xff] %v161
      %v166 = vld [vmem:[#allocation3] sm:$0xff]
      %v167 = vld [vmem:[#allocation3 + $0x8] sm:$0xff]
      %v168 = vld [vmem:[#allocation3 + $0x10] sm:$0xff]
      %v169 = vld [vmem:[#allocation3 + $0x18] sm:$0xff]
      %v174 = vcombine.low %v110, %v112
      %v175 = vcombine.high %v110, %v112
      %v176 = vcombine.low %v111, %v113
      %v177 = vcombine.high %v111, %v113
      %v182 = vsel %vm133, %v174, 0.0
      %v183 = vsel %vm133, %v175, 0.0
      %v184 = vsel %vm133, %v176, 0.0
      %v185 = vsel %vm133, %v177, 0.0
      %v186 = vadd.f32 %v182, 0.0
      %v187 = vadd.f32 %v183, 0.0
      %v188 = vadd.f32 %v184, 0.0
      %v189 = vadd.f32 %v185, 0.0
      %v190 = vadd.f32 %v166, %v186
      %v191 = vadd.f32 %v167, %v187
      %v192 = vadd.f32 %v168, %v188
      %v193 = vadd.f32 %v169, %v189
      %194 = vst [vmem:[#allocation3] sm:$0xff] %v190
      %195 = vst [vmem:[#allocation3 + $0x8] sm:$0xff] %v191
      %196 = vst [vmem:[#allocation3 + $0x10] sm:$0xff] %v192
      %197 = vst [vmem:[#allocation3 + $0x18] sm:$0xff] %v193
      %v198 = vld [vmem:[#allocation4] sm:$0xff]
      %v199 = vld [vmem:[#allocation4 + $0x8] sm:$0xff]
      %v200 = vld [vmem:[#allocation4 + $0x10] sm:$0xff]
      %v201 = vld [vmem:[#allocation4 + $0x18] sm:$0xff]
      %v206 = vcombine.low %v118, %v120
      %v207 = vcombine.high %v118, %v120
      %v208 = vcombine.low %v119, %v121
      %v209 = vcombine.high %v119, %v121
      %v214 = vsel %vm133, %v206, 0.0
      %v215 = vsel %vm133, %v207, 0.0
      %v216 = vsel %vm133, %v208, 0.0
      %v217 = vsel %vm133, %v209, 0.0
      %v218 = vadd.f32 %v214, 0.0
      %v219 = vadd.f32 %v215, 0.0
      %v220 = vadd.f32 %v216, 0.0
      %v221 = vadd.f32 %v217, 0.0
      %v222 = vadd.f32 %v198, %v218
      %v223 = vadd.f32 %v199, %v219
      %v224 = vadd.f32 %v200, %v220
      %v225 = vadd.f32 %v201, %v221
      %226 = vst [vmem:[#allocation4] sm:$0xff] %v222
      %227 = vst [vmem:[#allocation4 + $0x8] sm:$0xff] %v223
      %228 = vst [vmem:[#allocation4 + $0x10] sm:$0xff] %v224
      %229 = vst [vmem:[#allocation4 + $0x18] sm:$0xff] %v225
    $region25: #{tpu_custom_call.1} parent=1 // pred_fallthru
      _
    %p230 = scmp.le.s32.totalorder %s124, 3
    // Predicated region
    $region26: #{tpu_custom_call.1} parent=1 // pred_check
      %p231 = pneg %p230
    $region27: #{tpu_custom_call.1} parent=1 // pred_check_branch
      %233 = sbr.rel (%p231) target = $region29
    $region28: #{tpu_custom_call.1} parent=1 // pred_region
      %v234 = vld [vmem:[#allocation2] sm:$0xff]
      %v235 = vld [vmem:[#allocation2 + $0x8] sm:$0xff]
      %v236 = vld [vmem:[#allocation2 + $0x10] sm:$0xff]
      %v237 = vld [vmem:[#allocation2 + $0x18] sm:$0xff]
      %v238 = vadd.f32 %v98, 0.0
      %v239 = vadd.f32 %v99, 0.0
      %v240 = vadd.f32 %v100, 0.0
      %v241 = vadd.f32 %v101, 0.0
      %v246 = vcombine.low %v238, %v240
      %v247 = vcombine.high %v238, %v240
      %v248 = vcombine.low %v239, %v241
      %v249 = vcombine.high %v239, %v241
      %v254 = vadd.f32 %v234, %v246
      %v255 = vadd.f32 %v235, %v247
      %v256 = vadd.f32 %v236, %v248
      %v257 = vadd.f32 %v237, %v249
      %258 = vst [vmem:[#allocation2] sm:$0xff] %v254
      %259 = vst [vmem:[#allocation2 + $0x8] sm:$0xff] %v255
      %260 = vst [vmem:[#allocation2 + $0x10] sm:$0xff] %v256
      %261 = vst [vmem:[#allocation2 + $0x18] sm:$0xff] %v257
      %v262 = vld [vmem:[#allocation3] sm:$0xff]
      %v263 = vld [vmem:[#allocation3 + $0x8] sm:$0xff]
      %v264 = vld [vmem:[#allocation3 + $0x10] sm:$0xff]
      %v265 = vld [vmem:[#allocation3 + $0x18] sm:$0xff]
      %v266 = vadd.f32 %v110, 0.0
      %v267 = vadd.f32 %v111, 0.0
      %v268 = vadd.f32 %v112, 0.0
      %v269 = vadd.f32 %v113, 0.0
      %v274 = vcombine.low %v266, %v268
      %v275 = vcombine.high %v266, %v268
      %v276 = vcombine.low %v267, %v269
      %v277 = vcombine.high %v267, %v269
      %v282 = vadd.f32 %v262, %v274
      %v283 = vadd.f32 %v263, %v275
      %v284 = vadd.f32 %v264, %v276
      %v285 = vadd.f32 %v265, %v277
      %286 = vst [vmem:[#allocation3] sm:$0xff] %v282
      %287 = vst [vmem:[#allocation3 + $0x8] sm:$0xff] %v283
      %288 = vst [vmem:[#allocation3 + $0x10] sm:$0xff] %v284
      %289 = vst [vmem:[#allocation3 + $0x18] sm:$0xff] %v285
      %v290 = vld [vmem:[#allocation4] sm:$0xff]
      %v291 = vld [vmem:[#allocation4 + $0x8] sm:$0xff]
      %v292 = vld [vmem:[#allocation4 + $0x10] sm:$0xff]
      %v293 = vld [vmem:[#allocation4 + $0x18] sm:$0xff]
      %v294 = vadd.f32 %v118, 0.0
      %v295 = vadd.f32 %v119, 0.0
      %v296 = vadd.f32 %v120, 0.0
      %v297 = vadd.f32 %v121, 0.0
      %v302 = vcombine.low %v294, %v296
      %v303 = vcombine.high %v294, %v296
      %v304 = vcombine.low %v295, %v297
      %v305 = vcombine.high %v295, %v297
      %v310 = vadd.f32 %v290, %v302
      %v311 = vadd.f32 %v291, %v303
      %v312 = vadd.f32 %v292, %v304
      %v313 = vadd.f32 %v293, %v305
      %314 = vst [vmem:[#allocation4] sm:$0xff] %v310
      %315 = vst [vmem:[#allocation4 + $0x8] sm:$0xff] %v311
      %316 = vst [vmem:[#allocation4 + $0x10] sm:$0xff] %v312
      %317 = vst [vmem:[#allocation4 + $0x18] sm:$0xff] %v313
    $region29: #{tpu_custom_call.1} parent=1 // pred_fallthru
      _
    // Predicated region
    $region30: #{tpu_custom_call.1} parent=1 // pred_check
      %p318 = pneg %p70
    $region31: #{tpu_custom_call.1} parent=1 // pred_check_branch
      %320 = sbr.rel (%p318) target = $region33
    $region32: #{tpu_custom_call.1} parent=1 // pred_region
      %v321 = vld [vmem:[#allocation2] sm:$0xff]
      %v322 = vld [vmem:[#allocation2 + $0x8] sm:$0xff]
      %v323 = vld [vmem:[#allocation2 + $0x10] sm:$0xff]
      %v324 = vld [vmem:[#allocation2 + $0x18] sm:$0xff]
      %v325 = vadd.f32 %v321, %v322
      %v326 = vadd.f32 %v325, %v323
      %v327 = vadd.f32 %v326, %v324
      %328 = vadd.xlane.f32.xlu0 %v327
      %v329 = vpop.xlane.xlu0 %328
      %v330 = vrot.slane %v329, 4
      %v331 = vadd.f32 %v329, %v330
      %v332 = vrot.slane %v331, 2
      %v333 = vadd.f32 %v331, %v332
      %v334 = vrot.slane %v333, 1
      %v335 = vadd.f32 %v333, %v334
      %s336 = vtos %v335
      %v337 = vld [vmem:[#allocation3] sm:$0xff]
      %v338 = vld [vmem:[#allocation3 + $0x8] sm:$0xff]
      %v339 = vld [vmem:[#allocation3 + $0x10] sm:$0xff]
      %v340 = vld [vmem:[#allocation3 + $0x18] sm:$0xff]
      %v341 = vadd.f32 %v337, %v338
      %v342 = vadd.f32 %v341, %v339
      %v343 = vadd.f32 %v342, %v340
      %344 = vadd.xlane.f32.xlu0 %v343
      %v345 = vpop.xlane.xlu0 %344
      %v346 = vrot.slane %v345, 4
      %v347 = vadd.f32 %v345, %v346
      %v348 = vrot.slane %v347, 2
      %v349 = vadd.f32 %v347, %v348
      %v350 = vrot.slane %v349, 1
      %v351 = vadd.f32 %v349, %v350
      %s352 = vtos %v351
      %v353 = vld [vmem:[#allocation4] sm:$0xff]
      %v354 = vld [vmem:[#allocation4 + $0x8] sm:$0xff]
      %v355 = vld [vmem:[#allocation4 + $0x10] sm:$0xff]
      %v356 = vld [vmem:[#allocation4 + $0x18] sm:$0xff]
      %v357 = vadd.f32 %v353, %v354
      %v358 = vadd.f32 %v357, %v355
      %v359 = vadd.f32 %v358, %v356
      %360 = vadd.xlane.f32.xlu0 %v359
      %v361 = vpop.xlane.xlu0 %360
      %v362 = vrot.slane %v361, 4
      %v363 = vadd.f32 %v361, %v362
      %v364 = vrot.slane %v363, 2
      %v365 = vadd.f32 %v363, %v364
      %v366 = vrot.slane %v365, 1
      %v367 = vadd.f32 %v365, %v366
      %s368 = vtos %v367
      %v369 = vlaneseq
      %v370 = vshrl.u32 %v369, 7
      %vm371 = vcmp.eq.s32.totalorder %v370, 0
      %vm372 = vcmp.eq.s32.totalorder %v370, 1
      %vm373 = vcmp.eq.s32.totalorder %v370, 2
      %v374 = vstv %s368
      %v375 = vsel %vm373, %v374, 0.0
      %v376 = vstv %s352
      %v377 = vsel %vm372, %v376, %v375
      %v378 = vstv %s336
      %v379 = vsel %vm371, %v378, %v377
      %380 = vst [vmem:[#allocation10] sm:$0xff] %v379
    $region33: #{tpu_custom_call.1} parent=1 // pred_fallthru
      _
    // Predicated region
    $region34: #{tpu_custom_call.1} parent=1 // pred_check
      _
    $region35: #{tpu_custom_call.1} parent=1 // pred_check_branch
      %382 = sbr.rel (0) target = $region37
    $region36: #{tpu_custom_call.1} parent=1 // pred_region
      %s384 = ssub.s32 128, 128
      %385 = vsyncadd [#allocation7], %s384
      %s387 = sshll.u32 [#allocation10], 4
      %s388 = int_to_ptr.vmem [resolvable:$true] %s387
      %390 = dma.vmem_to_hbm [thread:$0]  %s388, 128, %s2, [#allocation7]
    $region37: #{tpu_custom_call.1} parent=1 // pred_fallthru
      _
    // Predicated region
    $region38: #{tpu_custom_call.1} parent=1 // pred_check
      _
    $region39: #{tpu_custom_call.1} parent=1 // pred_check_branch
      %392 = sbr.rel (0) target = $region41
    $region40: #{tpu_custom_call.1} parent=1 // pred_region
      %393 = dma.done [#allocation7], 128
    $region41: #{tpu_custom_call.1} parent=1 // pred_fallthru
      _
    %394 = vsyncpa [#allocation6], 1
    %395 = vsyncpa [#allocation9], 1
    %396 = vsyncpa [#allocation7], 1

</llo_original>
